<compile_context>
chip_gen: v5e
topology: v5e:2x2
jax: 0.10.0
libtpu: 0.0.40
codegen_flags: <defaults>
</compile_context>

<pallas_src>
import jax
import jax.numpy as jnp
from jax.experimental import pallas as pl
from jax.experimental.pallas import tpu as pltpu


def _sublane_unit(dtype):
    """Native sublane packing: 8 for f32, 16 for bf16, 32 for int8/fp8."""
    return max(8, 32 // jnp.dtype(dtype).itemsize)


def _largest_divisor_tile(dim, unit, cap):
    """Largest multiple of `unit` that divides `dim` and is <= cap; else full dim."""
    if dim <= cap:
        return dim
    m = (min(cap, dim) // unit) * unit
    while m >= unit:
        if dim % m == 0:
            return m
        m -= unit
    return dim


def _act_kernel(p_ref, w1_ref, b1_ref, w2_ref, o_ref):
    """Temporal conv chain for ONE batch element (grid axis 0 = n).

    p_ref : (1, C, T)    pooled spatial means
    w1_ref: (C/4, 3*C)   conv1 weights, taps [k=0 | k=1 | k=2] stacked, BN scale folded
    b1_ref: (C/4, 1)     folded BN shift
    w2_ref: (C, 3*C/4)   conv2 (dilation 2) weights, taps stacked
    o_ref : (1, C, T)    scale = 1 + sigmoid(conv2(relu(conv1(p)))), in x.dtype
    """
    p = p_ref[0].astype(jnp.float32)                       # (C, T)
    tdim = p.shape[-1]
    t_idx = jax.lax.broadcasted_iota(jnp.int32, (1, tdim), 1)

    def conv_taps(w_ref, a, d, cin):
        # y[:, t'] = W_k0 @ a(t'-d) + W_k1 @ a(t') + W_k2 @ a(t'+d), zero-padded edges.
        # Tap-accumulated matmuls (no concatenate temp).
        fwd = jnp.where(t_idx >= d, jnp.roll(a, d, axis=-1), 0.0)
        bwd = jnp.where(t_idx < tdim - d, jnp.roll(a, -d, axis=-1), 0.0)
        y = jnp.dot(w_ref[:, :cin], fwd, preferred_element_type=jnp.float32)
        y = y + jnp.dot(w_ref[:, cin:2 * cin], a, preferred_element_type=jnp.float32)
        y = y + jnp.dot(w_ref[:, 2 * cin:], bwd, preferred_element_type=jnp.float32)
        return y

    c = p.shape[0]
    c4 = w1_ref.shape[0]
    # Conv1d(C -> C/4, k=3, pad=1) with BN scale folded into the weights; BN shift + ReLU.
    y1 = jnp.maximum(conv_taps(w1_ref, p, 1, c) + b1_ref[...], 0.0)
    # Conv1d(C/4 -> C, k=3, pad=2, dilation=2).
    y2 = conv_taps(w2_ref, y1, 2, c4)
    o_ref[0] = (1.0 + jax.nn.sigmoid(y2)).astype(o_ref.dtype)   # out = x * (1 + act)


def _scale_kernel(x_ref, s_ref, o_ref):
    # x_ref: (1, ct_tile, hw_tile), s_ref: (1, ct_tile, 1) -> single broadcast multiply.
    o_ref[...] = (x_ref[...] * s_ref[...]).astype(o_ref.dtype)


def tab_forward(x, w1, w2, bn_gamma, bn_beta, bn_mean, bn_var, eps=1e-5):
    n, c, t, h, w_ = x.shape
    c4 = c // 4
    hw = h * w_
    ct = c * t
    dt = x.dtype

    # ------------------ act pre-pass (tiny, off the streaming path) ------------------
    pooled = x.astype(jnp.float32).mean(axis=(3, 4))                 # (n, c, t)

    inv_std = jax.lax.rsqrt(bn_var.astype(jnp.float32) + eps)
    scale1 = bn_gamma.astype(jnp.float32) * inv_std                  # (c4,)
    shift1 = (bn_beta.astype(jnp.float32)
              - bn_mean.astype(jnp.float32) * scale1).reshape(c4, 1)  # (c4, 1)
    # Stack the 3 temporal taps [k=0 | k=1 | k=2]; fold BN scale into conv1 weights.
    w1s = (jnp.transpose(w1, (0, 2, 1)).reshape(c4, 3 * c).astype(jnp.float32)
           * scale1[:, None])
    w2s = jnp.transpose(w2, (0, 2, 1)).reshape(c, 3 * c4).astype(jnp.float32)

    scale_nct = pl.pallas_call(
        _act_kernel,
        out_shape=jax.ShapeDtypeStruct((n, c, t), dt),
        grid_spec=pltpu.PrefetchScalarGridSpec(
            num_scalar_prefetch=0,
            grid=(n,),
            in_specs=[
                pl.BlockSpec((1, c, t), lambda i: (i, 0, 0)),
                pl.BlockSpec((c4, 3 * c), lambda i: (0, 0)),
                pl.BlockSpec((c4, 1), lambda i: (0, 0)),
                pl.BlockSpec((c, 3 * c4), lambda i: (0, 0)),
            ],
            out_specs=pl.BlockSpec((1, c, t), lambda i: (i, 0, 0)),
        ),
        compiler_params=pltpu.CompilerParams(
            dimension_semantics=("parallel",),
            vmem_limit_bytes=32 * 1024 * 1024,
        ),
    )(pooled, w1s, shift1, w2s)

    # (n, c, t) -> (n, c*t, 1): row index ch*t + tt matches x.reshape(n, c*t, hw) rows.
    # Pure reshape, no transpose / extra dispatch on the serial path.
    scale = scale_nct.reshape(n, ct, 1)

    # ------------------ streaming elementwise pass: out = x * scale ------------------
    x3 = x.reshape(n, ct, hw)
    itemsize = jnp.dtype(dt).itemsize
    unit = _sublane_unit(dt)
    target_bytes = 2 * 1024 * 1024                # ~2 MiB per x block: per-step DMA
    #                                               overhead <5%, fits every chip's VMEM.
    # Lane tile: lane-dense (multiple of 128) divisor of hw where possible, else full hw.
    hw_tile = _largest_divisor_tile(hw, 128, 2048) if hw >= 128 else hw
    # Sublane tile from the byte budget (handles small / non-128-multiple hw too).
    ct_cap = max(unit, target_bytes // max(1, hw_tile * itemsize))
    ct_tile = _largest_divisor_tile(ct, unit, ct_cap)
    # v7x dual-TC balance: keep the all-parallel grid at >= 4 steps when possible.
    while (n * (ct // ct_tile) * (hw // hw_tile) < 4
           and ct_tile % (2 * unit) == 0):
        ct_tile //= 2

    out = pl.pallas_call(
        _scale_kernel,
        out_shape=jax.ShapeDtypeStruct((n, ct, hw), dt),
        grid_spec=pltpu.PrefetchScalarGridSpec(
            num_scalar_prefetch=0,
            grid=(n, ct // ct_tile, hw // hw_tile),
            in_specs=[
                pl.BlockSpec((1, ct_tile, hw_tile), lambda i, j, k: (i, j, k)),
                pl.BlockSpec((1, ct_tile, 1), lambda i, j, k: (i, j, 0)),
            ],
            out_specs=pl.BlockSpec((1, ct_tile, hw_tile), lambda i, j, k: (i, j, k)),
        ),
        compiler_params=pltpu.CompilerParams(
            dimension_semantics=("parallel", "parallel", "parallel"),
            vmem_limit_bytes=32 * 1024 * 1024,
        ),
    )(x3, scale)
    return out.reshape(n, c, t, h, w_)


def tab_reference(x, w1, w2, bn_gamma, bn_beta, bn_mean, bn_var, eps=1e-5):
    """Pure-JAX/XLA reference matching the PyTorch forward (eval-mode BN)."""
    pooled = x.mean(axis=(3, 4))                                     # (n, c, t)
    y1 = jax.lax.conv_general_dilated(
        pooled, w1, window_strides=(1,), padding=[(1, 1)],
        rhs_dilation=(1,), dimension_numbers=("NCH", "OIH", "NCH"))
    y1 = (y1 - bn_mean[None, :, None]) / jnp.sqrt(bn_var + eps)[None, :, None]
    y1 = y1 * bn_gamma[None, :, None] + bn_beta[None, :, None]
    y1 = jnp.maximum(y1, 0.0)
    y2 = jax.lax.conv_general_dilated(
        y1, w2, window_strides=(1,), padding=[(2, 2)],
        rhs_dilation=(2,), dimension_numbers=("NCH", "OIH", "NCH"))
    act = jax.nn.sigmoid(y2)                                         # (n, c, t)
    return x + x * act[:, :, :, None, None]


if __name__ == "__main__":
    # Small shapes: batch=2, channels=16 (so C//4 = 4), temporal=8, spatial=16x16.
    n, c, t, h, w = 2, 16, 8, 16, 16
    c4 = c // 4

    key = jax.random.PRNGKey(0)
    kx, k1, k2, k3, k4, k5, k6 = jax.random.split(key, 7)

    x = jax.random.normal(kx, (n, c, t, h, w), jnp.float32)
    w1 = 0.1 * jax.random.normal(k1, (c4, c, 3), jnp.float32)   # Conv1d weight (out, in, k)
    w2 = 0.1 * jax.random.normal(k2, (c, c4, 3), jnp.float32)   # Conv1d weight (out, in, k)
    bn_gamma = 1.0 + 0.1 * jax.random.normal(k3, (c4,), jnp.float32)
    bn_beta = 0.1 * jax.random.normal(k4, (c4,), jnp.float32)
    bn_mean = 0.1 * jax.random.normal(k5, (c4,), jnp.float32)
    bn_var = jnp.abs(1.0 + 0.1 * jax.random.normal(k6, (c4,), jnp.float32))

    out = tab_forward(x, w1, w2, bn_gamma, bn_beta, bn_mean, bn_var)
    out = jax.block_until_ready(out)

    ref = tab_reference(x, w1, w2, bn_gamma, bn_beta, bn_mean, bn_var)
    assert out.shape == (n, c, t, h, w)
    assert jnp.allclose(out, ref, rtol=2e-5, atol=2e-5), \
        f"max abs err = {jnp.max(jnp.abs(out - ref))}"

    print("KERNEL_OK")
</pallas_src>

<mosaic_0001>
module attributes {stable_mosaic.version = 11 : i64} {
  func.func @_act_kernel(%arg0: i32, %arg1: memref<1x16x8xf32, #tpu.memory_space<vmem>>, %arg2: memref<4x48xf32, #tpu.memory_space<vmem>>, %arg3: memref<4x1xf32, #tpu.memory_space<vmem>>, %arg4: memref<16x12xf32, #tpu.memory_space<vmem>>, %arg5: memref<1x16x8xf32, #tpu.memory_space<vmem>>) attributes {dimension_semantics = [#tpu.dimension_semantics<parallel>], iteration_bounds = array<i64: 2>, scalar_prefetch = 0 : i64, scratch_operands = 0 : i64, tpu.core_type = #tpu.core_type<tc>, window_params = [{transform_indices = @transform_0, window_bounds = array<i64: 1, 16, 8>}, {pipeline_mode = #tpu.pipeline_mode<synchronous>, transform_indices = @transform_1, window_bounds = array<i64: 4, 48>}, {pipeline_mode = #tpu.pipeline_mode<synchronous>, transform_indices = @transform_2, window_bounds = array<i64: 4, 1>}, {pipeline_mode = #tpu.pipeline_mode<synchronous>, transform_indices = @transform_3, window_bounds = array<i64: 16, 12>}, {transform_indices = @transform_4, window_bounds = array<i64: 1, 16, 8>}]} {
    %c0 = arith.constant 0 : index
    %c0_0 = arith.constant 0 : index
    %c0_1 = arith.constant 0 : index
    %0 = vector.load %arg1[%c0, %c0_0, %c0_1] : memref<1x16x8xf32, #tpu.memory_space<vmem>>, vector<1x16x8xf32>
    %1 = vector.shape_cast %0 : vector<1x16x8xf32> to vector<16x8xf32>
    %2 = tpu.iota {dimensions = array<i32: 1>} : vector<1x8xi32>
    %c1_i32 = arith.constant 1 : i32
    %3 = vector.broadcast %c1_i32 : i32 to vector<1x8xi32>
    %4 = arith.cmpi sge, %2, %3 : vector<1x8xi32>
    %5 = vector.extract_strided_slice %1 {offsets = [0, 7], sizes = [16, 1], strides = [1, 1]} : vector<16x8xf32> to vector<16x1xf32>
    %6 = vector.extract_strided_slice %1 {offsets = [0, 0], sizes = [16, 7], strides = [1, 1]} : vector<16x8xf32> to vector<16x7xf32>
    %7 = tpu.concatenate %5, %6 in 1 : vector<16x1xf32>, vector<16x7xf32> -> vector<16x8xf32>
    %cst = arith.constant 0.000000e+00 : f32
    %8 = vector.shape_cast %4 : vector<1x8xi1> to vector<1x8xi1>
    %9 = vector.broadcast %8 : vector<1x8xi1> to vector<16x8xi1>
    %10 = vector.broadcast %cst : f32 to vector<16x8xf32>
    %11 = arith.select %9, %7, %10 : vector<16x8xi1>, vector<16x8xf32>
    %c7_i32 = arith.constant 7 : i32
    %12 = vector.broadcast %c7_i32 : i32 to vector<1x8xi32>
    %13 = arith.cmpi slt, %2, %12 : vector<1x8xi32>
    %14 = vector.extract_strided_slice %1 {offsets = [0, 1], sizes = [16, 7], strides = [1, 1]} : vector<16x8xf32> to vector<16x7xf32>
    %15 = vector.extract_strided_slice %1 {offsets = [0, 0], sizes = [16, 1], strides = [1, 1]} : vector<16x8xf32> to vector<16x1xf32>
    %16 = tpu.concatenate %14, %15 in 1 : vector<16x7xf32>, vector<16x1xf32> -> vector<16x8xf32>
    %cst_2 = arith.constant 0.000000e+00 : f32
    %17 = vector.shape_cast %13 : vector<1x8xi1> to vector<1x8xi1>
    %18 = vector.broadcast %17 : vector<1x8xi1> to vector<16x8xi1>
    %19 = vector.broadcast %cst_2 : f32 to vector<16x8xf32>
    %20 = arith.select %18, %16, %19 : vector<16x8xi1>, vector<16x8xf32>
    %c0_3 = arith.constant 0 : index
    %c0_4 = arith.constant 0 : index
    %21 = vector.load %arg2[%c0_3, %c0_4] : memref<4x48xf32, #tpu.memory_space<vmem>>, vector<4x16xf32>
    %cst_5 = arith.constant dense<0.000000e+00> : vector<4x8xf32>
    %22 = tpu.matmul %21, %11, %cst_5 {dimension_numbers = #tpu.dot_dimension_numbers<[1], [0], [0], [1], [0, 0, 1, 1], [], []>} : vector<4x16xf32>, vector<16x8xf32>, vector<4x8xf32> -> vector<4x8xf32>
    %c0_6 = arith.constant 0 : index
    %c16 = arith.constant 16 : index
    %23 = vector.load %arg2[%c0_6, %c16] : memref<4x48xf32, #tpu.memory_space<vmem>>, vector<4x16xf32>
    %cst_7 = arith.constant dense<0.000000e+00> : vector<4x8xf32>
    %24 = tpu.matmul %23, %1, %cst_7 {dimension_numbers = #tpu.dot_dimension_numbers<[1], [0], [0], [1], [0, 0, 1, 1], [], []>} : vector<4x16xf32>, vector<16x8xf32>, vector<4x8xf32> -> vector<4x8xf32>
    %25 = arith.addf %22, %24 : vector<4x8xf32>
    %c0_8 = arith.constant 0 : index
    %c32 = arith.constant 32 : index
    %26 = vector.load %arg2[%c0_8, %c32] : memref<4x48xf32, #tpu.memory_space<vmem>>, vector<4x16xf32>
    %cst_9 = arith.constant dense<0.000000e+00> : vector<4x8xf32>
    %27 = tpu.matmul %26, %20, %cst_9 {dimension_numbers = #tpu.dot_dimension_numbers<[1], [0], [0], [1], [0, 0, 1, 1], [], []>} : vector<4x16xf32>, vector<16x8xf32>, vector<4x8xf32> -> vector<4x8xf32>
    %28 = arith.addf %25, %27 : vector<4x8xf32>
    %c0_10 = arith.constant 0 : index
    %c0_11 = arith.constant 0 : index
    %29 = vector.load %arg3[%c0_10, %c0_11] : memref<4x1xf32, #tpu.memory_space<vmem>>, vector<4x1xf32>
    %30 = vector.broadcast %29 : vector<4x1xf32> to vector<4x8xf32>
    %31 = arith.addf %28, %30 : vector<4x8xf32>
    %cst_12 = arith.constant 0.000000e+00 : f32
    %32 = vector.broadcast %cst_12 : f32 to vector<4x8xf32>
    %33 = arith.maximumf %31, %32 : vector<4x8xf32>
    %c2_i32 = arith.constant 2 : i32
    %34 = vector.broadcast %c2_i32 : i32 to vector<1x8xi32>
    %35 = arith.cmpi sge, %2, %34 : vector<1x8xi32>
    %36 = vector.extract_strided_slice %33 {offsets = [0, 6], sizes = [4, 2], strides = [1, 1]} : vector<4x8xf32> to vector<4x2xf32>
    %37 = vector.extract_strided_slice %33 {offsets = [0, 0], sizes = [4, 6], strides = [1, 1]} : vector<4x8xf32> to vector<4x6xf32>
    %38 = tpu.concatenate %36, %37 in 1 : vector<4x2xf32>, vector<4x6xf32> -> vector<4x8xf32>
    %cst_13 = arith.constant 0.000000e+00 : f32
    %39 = vector.shape_cast %35 : vector<1x8xi1> to vector<1x8xi1>
    %40 = vector.broadcast %39 : vector<1x8xi1> to vector<4x8xi1>
    %41 = vector.broadcast %cst_13 : f32 to vector<4x8xf32>
    %42 = arith.select %40, %38, %41 : vector<4x8xi1>, vector<4x8xf32>
    %c6_i32 = arith.constant 6 : i32
    %43 = vector.broadcast %c6_i32 : i32 to vector<1x8xi32>
    %44 = arith.cmpi slt, %2, %43 : vector<1x8xi32>
    %45 = vector.extract_strided_slice %33 {offsets = [0, 2], sizes = [4, 6], strides = [1, 1]} : vector<4x8xf32> to vector<4x6xf32>
    %46 = vector.extract_strided_slice %33 {offsets = [0, 0], sizes = [4, 2], strides = [1, 1]} : vector<4x8xf32> to vector<4x2xf32>
    %47 = tpu.concatenate %45, %46 in 1 : vector<4x6xf32>, vector<4x2xf32> -> vector<4x8xf32>
    %cst_14 = arith.constant 0.000000e+00 : f32
    %48 = vector.shape_cast %44 : vector<1x8xi1> to vector<1x8xi1>
    %49 = vector.broadcast %48 : vector<1x8xi1> to vector<4x8xi1>
    %50 = vector.broadcast %cst_14 : f32 to vector<4x8xf32>
    %51 = arith.select %49, %47, %50 : vector<4x8xi1>, vector<4x8xf32>
    %c0_15 = arith.constant 0 : index
    %c0_16 = arith.constant 0 : index
    %52 = vector.load %arg4[%c0_15, %c0_16] : memref<16x12xf32, #tpu.memory_space<vmem>>, vector<16x4xf32>
    %cst_17 = arith.constant dense<0.000000e+00> : vector<16x8xf32>
    %53 = tpu.matmul %52, %42, %cst_17 {dimension_numbers = #tpu.dot_dimension_numbers<[1], [0], [0], [1], [0, 0, 1, 1], [], []>} : vector<16x4xf32>, vector<4x8xf32>, vector<16x8xf32> -> vector<16x8xf32>
    %c0_18 = arith.constant 0 : index
    %c4 = arith.constant 4 : index
    %54 = vector.load %arg4[%c0_18, %c4] : memref<16x12xf32, #tpu.memory_space<vmem>>, vector<16x4xf32>
    %cst_19 = arith.constant dense<0.000000e+00> : vector<16x8xf32>
    %55 = tpu.matmul %54, %33, %cst_19 {dimension_numbers = #tpu.dot_dimension_numbers<[1], [0], [0], [1], [0, 0, 1, 1], [], []>} : vector<16x4xf32>, vector<4x8xf32>, vector<16x8xf32> -> vector<16x8xf32>
    %56 = arith.addf %53, %55 : vector<16x8xf32>
    %c0_20 = arith.constant 0 : index
    %c8 = arith.constant 8 : index
    %57 = vector.load %arg4[%c0_20, %c8] : memref<16x12xf32, #tpu.memory_space<vmem>>, vector<16x4xf32>
    %cst_21 = arith.constant dense<0.000000e+00> : vector<16x8xf32>
    %58 = tpu.matmul %57, %51, %cst_21 {dimension_numbers = #tpu.dot_dimension_numbers<[1], [0], [0], [1], [0, 0, 1, 1], [], []>} : vector<16x4xf32>, vector<4x8xf32>, vector<16x8xf32> -> vector<16x8xf32>
    %59 = arith.addf %56, %58 : vector<16x8xf32>
    %60 = arith.negf %59 : vector<16x8xf32>
    %61 = math.exp %60 : vector<16x8xf32>
    %cst_22 = arith.constant 1.000000e+00 : f32
    %62 = vector.broadcast %cst_22 : f32 to vector<16x8xf32>
    %63 = arith.addf %62, %61 : vector<16x8xf32>
    %64 = arith.divf %62, %63 : vector<16x8xf32>
    %cst_23 = arith.constant 1.000000e+00 : f32
    %65 = vector.broadcast %cst_23 : f32 to vector<16x8xf32>
    %66 = arith.addf %65, %64 : vector<16x8xf32>
    %c0_24 = arith.constant 0 : index
    %c0_25 = arith.constant 0 : index
    %c0_26 = arith.constant 0 : index
    %67 = vector.load %arg5[%c0_24, %c0_25, %c0_26] : memref<1x16x8xf32, #tpu.memory_space<vmem>>, vector<1x16x8xf32>
    %68 = vector.shape_cast %67 : vector<1x16x8xf32> to vector<16x8xf32>
    %69 = vector.shape_cast %66 : vector<16x8xf32> to vector<1x16x8xf32>
    tpu.vector_store %arg5[%c0_24, %c0_25, %c0_26], %69 {strides = array<i32>} : memref<1x16x8xf32, #tpu.memory_space<vmem>>, vector<1x16x8xf32>,
    return
  }
  func.func @transform_0(%arg0: i32) -> (i32, i32, i32) {
    %c0_i32 = arith.constant 0 : i32
    %c0_i32_0 = arith.constant 0 : i32
    %c0_i32_1 = arith.constant 0 : i32
    return %arg0, %c0_i32, %c0_i32_0 : i32, i32, i32
  }
  func.func @transform_1(%arg0: i32) -> (i32, i32) {
    %c0_i32 = arith.constant 0 : i32
    %c0_i32_0 = arith.constant 0 : i32
    %c0_i32_1 = arith.constant 0 : i32
    return %c0_i32, %c0_i32_0 : i32, i32
  }
  func.func @transform_2(%arg0: i32) -> (i32, i32) {
    %c0_i32 = arith.constant 0 : i32
    %c0_i32_0 = arith.constant 0 : i32
    %c0_i32_1 = arith.constant 0 : i32
    return %c0_i32, %c0_i32_0 : i32, i32
  }
  func.func @transform_3(%arg0: i32) -> (i32, i32) {
    %c0_i32 = arith.constant 0 : i32
    %c0_i32_0 = arith.constant 0 : i32
    %c0_i32_1 = arith.constant 0 : i32
    return %c0_i32, %c0_i32_0 : i32, i32
  }
  func.func @transform_4(%arg0: i32) -> (i32, i32, i32) {
    %c0_i32 = arith.constant 0 : i32
    %c0_i32_0 = arith.constant 0 : i32
    %c0_i32_1 = arith.constant 0 : i32
    return %arg0, %c0_i32, %c0_i32_0 : i32, i32, i32
  }
}

</mosaic_0001>

<llo_original>
// kernel: tpu_custom_call.1
$region0: #{tpu_custom_call.1}
  #allocation0 [shape = 'u32[]', space=smem, size = 0x4, offset = 0x4, fixed_abs, tag = 'smem constant byte address 0x4 - core index']
  #allocation1 [shape = 'u32[72,128]{1,0:T(1,128)}', space=vmem, size = 0x9000, scoped, tag = 'internal scratch']
  %s0 = inlined_call_operand.vmem [shape: f32[2,16,8], index: 0, kind: input, shape index: {}]
  %s1 = inlined_call_operand.vmem [shape: f32[4,48], index: 1, kind: input, shape index: {}]
  %s2 = inlined_call_operand.vmem [shape: f32[4,1], index: 2, kind: input, shape index: {}]
  %s3 = inlined_call_operand.vmem [shape: f32[16,12], index: 3, kind: input, shape index: {}]
  %s4 = inlined_call_operand.vmem [shape: f32[2,16,8], index: 4, kind: output, shape index: {}]
  %s5 = sld [smem:[#allocation0]]
  $region49: #{tpu_custom_call.1} parent=0
    _
  %s7 = ssub.s32 1, %s5
  %s8 = scalar_select 0, %s7, %s5
  loop: start=0, step=1, limit=4
  $region2: #{tpu_custom_call.1} parent=0 // loop_pre_header
    _
  $region3: #{tpu_custom_call.1} parent=0 // loop_header
    %s10 = sphi 0, %s14
    %p11 = scmp.ge.s32.totalorder %s10, 4
    %s20 = sphi 0, %s22
    %s23 = sphi 0, %s20
    %s24 = sphi 0, %s23
    %s40 = sphi 0, %s24
    %s44 = sphi 0, %s44
    %s46 = sphi 0, %s44
    %s47 = sphi 0, %s46
    %s61 = sphi 0, %s47
    %s65 = sphi 0, %s65
    %s67 = sphi 0, %s65
    %s68 = sphi 0, %s67
    %s82 = sphi 0, %s68
    %s86 = sphi 0, %s86
    %s88 = sphi 0, %s86
    %s89 = sphi 0, %s88
    %s103 = sphi 0, %s89
    %s109 = sphi 0, %s111
    %s112 = sphi 0, %s109
    %s113 = sphi 0, %s112
    %s129 = sphi 0, %s113
  $region4: #{tpu_custom_call.1} parent=0 // loop_header_branch
    %13 = sbr.rel (%p11) target = $region8
  $region5: #{tpu_custom_call.1} parent=0 // loop_body
    %s15 = ssub.s32 %s10, 1
    %s16 = ssub.s32 %s10, 2
    %s17 = sadd.s32 %s10, 1
    %s18 = ssub.s32 %s10, %s17
    %p19 = scmp.eq.s32.totalorder %s18, 0
    %s21 = sadd.s32 %s20, 1
    %s22 = scalar_select %p19, %s20, %s21
    %p25 = pneg %p19
    %p26 = scmp.eq.s32.totalorder %s10, 1
    %p27 = por %p25, %p26
    %p28 = scmp.ne.s32.totalorder %s20, %s23
    %p29 = scmp.eq.s32.totalorder %s10, 0
    %p30 = por %p28, %p29
    %p31 = scmp.ne.s32.totalorder %s20, %s23
    %p32 = scmp.eq.s32.totalorder %s15, 1
    %p33 = por %p31, %p32
    %p34 = scmp.ne.s32.totalorder %s23, %s24
    %p35 = scmp.eq.s32.totalorder %s15, 0
    %p36 = por %p34, %p35
    %p37 = scmp.ne.s32.totalorder %s23, %s24
    %p38 = scmp.eq.s32.totalorder %s16, 1
    %p39 = por %p37, %p38
    %p41 = scmp.ne.s32.totalorder %s24, %s40
    %p42 = scmp.eq.s32.totalorder %s16, 0
    %p43 = por %p41, %p42
    %s45 = sadd.s32 %s44, 1
    %p48 = scmp.eq.s32.totalorder %s10, 1
    %p49 = scmp.ne.s32.totalorder %s44, %s46
    %p50 = scmp.eq.s32.totalorder %s10, 0
    %p51 = por %p49, %p50
    %p52 = scmp.ne.s32.totalorder %s44, %s46
    %p53 = scmp.eq.s32.totalorder %s15, 1
    %p54 = por %p52, %p53
    %p55 = scmp.ne.s32.totalorder %s46, %s47
    %p56 = scmp.eq.s32.totalorder %s15, 0
    %p57 = por %p55, %p56
    %p58 = scmp.ne.s32.totalorder %s46, %s47
    %p59 = scmp.eq.s32.totalorder %s16, 1
    %p60 = por %p58, %p59
    %p62 = scmp.ne.s32.totalorder %s47, %s61
    %p63 = scmp.eq.s32.totalorder %s16, 0
    %p64 = por %p62, %p63
    %s66 = sadd.s32 %s65, 1
    %p69 = scmp.eq.s32.totalorder %s10, 1
    %p70 = scmp.ne.s32.totalorder %s65, %s67
    %p71 = scmp.eq.s32.totalorder %s10, 0
    %p72 = por %p70, %p71
    %p73 = scmp.ne.s32.totalorder %s65, %s67
    %p74 = scmp.eq.s32.totalorder %s15, 1
    %p75 = por %p73, %p74
    %p76 = scmp.ne.s32.totalorder %s67, %s68
    %p77 = scmp.eq.s32.totalorder %s15, 0
    %p78 = por %p76, %p77
    %p79 = scmp.ne.s32.totalorder %s67, %s68
    %p80 = scmp.eq.s32.totalorder %s16, 1
    %p81 = por %p79, %p80
    %p83 = scmp.ne.s32.totalorder %s68, %s82
    %p84 = scmp.eq.s32.totalorder %s16, 0
    %p85 = por %p83, %p84
    %s87 = sadd.s32 %s86, 1
    %p90 = scmp.eq.s32.totalorder %s10, 1
    %p91 = scmp.ne.s32.totalorder %s86, %s88
    %p92 = scmp.eq.s32.totalorder %s10, 0
    %p93 = por %p91, %p92
    %p94 = scmp.ne.s32.totalorder %s86, %s88
    %p95 = scmp.eq.s32.totalorder %s15, 1
    %p96 = por %p94, %p95
    %p97 = scmp.ne.s32.totalorder %s88, %s89
    %p98 = scmp.eq.s32.totalorder %s15, 0
    %p99 = por %p97, %p98
    %p100 = scmp.ne.s32.totalorder %s88, %s89
    %p101 = scmp.eq.s32.totalorder %s16, 1
    %p102 = por %p100, %p101
    %p104 = scmp.ne.s32.totalorder %s89, %s103
    %p105 = scmp.eq.s32.totalorder %s16, 0
    %p106 = por %p104, %p105
    %s107 = ssub.s32 %s10, %s17
    %p108 = scmp.eq.s32.totalorder %s107, 0
    %s110 = sadd.s32 %s109, 1
    %s111 = scalar_select %p108, %s109, %s110
    %p114 = pneg %p108
    %p115 = scmp.eq.s32.totalorder %s10, 1
    %p116 = por %p114, %p115
    %p117 = scmp.ne.s32.totalorder %s109, %s112
    %p118 = scmp.eq.s32.totalorder %s10, 0
    %p119 = por %p117, %p118
    %p120 = scmp.ne.s32.totalorder %s109, %s112
    %p121 = scmp.eq.s32.totalorder %s15, 1
    %p122 = por %p120, %p121
    %p123 = scmp.ne.s32.totalorder %s112, %s113
    %p124 = scmp.eq.s32.totalorder %s15, 0
    %p125 = por %p123, %p124
    %p126 = scmp.ne.s32.totalorder %s112, %s113
    %p127 = scmp.eq.s32.totalorder %s16, 1
    %p128 = por %p126, %p127
    %p130 = scmp.ne.s32.totalorder %s113, %s129
    %p131 = scmp.eq.s32.totalorder %s16, 0
    %p132 = por %p130, %p131
    %p133 = scmp.le.s32.totalorder 1, %s10
    %p134 = scmp.lt.s32.totalorder %s10, 3
    %p135 = pnand %p133, %p134
    %p136 = pneg %p135
    // Predicated region
    $region9: #{tpu_custom_call.1} parent=5 // pred_check
      _
    $region10: #{tpu_custom_call.1} parent=5 // pred_check_branch
      %138 = sbr.rel (%p135) target = $region12
    $region11: #{tpu_custom_call.1} parent=5 // pred_region
      %s139 = ssub.s32 %s10, 1
      // Predicated region
      $region13: #{tpu_custom_call.1} parent=11 // pred_check
        %p140 = pneg %p57
      $region14: #{tpu_custom_call.1} parent=11 // pred_check_branch
        %142 = sbr.rel (%p140) target = $region16
      $region15: #{tpu_custom_call.1} parent=11 // pred_region
        _
      $region16: #{tpu_custom_call.1} parent=11 // pred_fallthru
        _
      // Predicated region
      $region17: #{tpu_custom_call.1} parent=11 // pred_check
        %p143 = pneg %p78
      $region18: #{tpu_custom_call.1} parent=11 // pred_check_branch
        %145 = sbr.rel (%p143) target = $region20
      $region19: #{tpu_custom_call.1} parent=11 // pred_region
        _
      $region20: #{tpu_custom_call.1} parent=11 // pred_fallthru
        _
      // Predicated region
      $region21: #{tpu_custom_call.1} parent=11 // pred_check
        %p146 = pneg %p99
      $region22: #{tpu_custom_call.1} parent=11 // pred_check_branch
        %148 = sbr.rel (%p146) target = $region24
      $region23: #{tpu_custom_call.1} parent=11 // pred_region
        _
      $region24: #{tpu_custom_call.1} parent=11 // pred_fallthru
        _
    $region12: #{tpu_custom_call.1} parent=5 // pred_fallthru
      _
    %p149 = scmp.lt.s32.totalorder %s10, 2
    // Predicated region
    $region25: #{tpu_custom_call.1} parent=5 // pred_check
      %p150 = pneg %p149
    $region26: #{tpu_custom_call.1} parent=5 // pred_check_branch
      %152 = sbr.rel (%p150) target = $region28
    $region27: #{tpu_custom_call.1} parent=5 // pred_region
      // Predicated region
      $region29: #{tpu_custom_call.1} parent=27 // pred_check
        %p153 = pneg %p30
      $region30: #{tpu_custom_call.1} parent=27 // pred_check_branch
        %155 = sbr.rel (%p153) target = $region32
      $region31: #{tpu_custom_call.1} parent=27 // pred_region
        %p156 = scmp.lt.s32.totalorder %s10, 1
        %s157 = scalar_select %p156, %s10, 1
        %s158 = smul.addr %s157, 2
        %s159 = smul.addr %s158, 8
        %s160 = scalar_lea.vmem %s0, %s159
      $region32: #{tpu_custom_call.1} parent=27 // pred_fallthru
        _
    $region28: #{tpu_custom_call.1} parent=5 // pred_fallthru
      _
    %p161 = scmp.le.s32.totalorder 1, %s10
    %p162 = scmp.lt.s32.totalorder %s10, 3
    %p163 = pnand %p161, %p162
    %p164 = pneg %p163
    // Predicated region
    $region33: #{tpu_custom_call.1} parent=5 // pred_check
      _
    $region34: #{tpu_custom_call.1} parent=5 // pred_check_branch
      %166 = sbr.rel (%p163) target = $region36
    $region35: #{tpu_custom_call.1} parent=5 // pred_region
      %s167 = ssub.s32 %s10, 1
      %p168 = scmp.lt.s32.totalorder %s15, 1
      %s169 = scalar_select %p168, %s15, 1
      %s170 = smul.addr %s169, 2
      %s171 = smul.addr %s170, 8
      %s172 = scalar_lea.vmem %s0, %s171
      %p173 = pneg %p36
      %p174 = pneg %p33
      %p175 = pneg %p57
      %p176 = pneg %p54
      %p177 = pneg %p78
      %p178 = pneg %p75
      %p179 = pneg %p99
      %p180 = pneg %p96
      %p181 = pneg %p125
      %p182 = pneg %p122
      %p183 = scmp.lt.s32.totalorder %s15, 1
      %s184 = scalar_select %p183, %s15, 1
      %s185 = smul.addr %s184, 2
      %s186 = smul.addr %s185, 8
      %s187 = scalar_lea.vmem %s4, %s186
      %p188 = scmp.lt.s32.totalorder %s15, 1
      %s189 = scalar_select %p188, %s15, 1
      %s190 = smul.addr %s189, 2
      %s191 = smul.addr %s190, 8
      %s192 = scalar_lea.vmem %s0, %s191
      %p193 = scmp.lt.s32.totalorder %s15, 1
      %s194 = scalar_select %p193, %s15, 1
      %s195 = smul.addr %s194, 2
      %s196 = smul.addr %s195, 8
      %s197 = scalar_lea.vmem %s4, %s196
      %v198 = vld [vmem:[%s192] sm:$0xff]
      %v199 = vld [vmem:[%s192 + $0x8] sm:$0xff]
      %v200 = vlaneseq
      %v201 = vand.u32 %v200, 127
      %vm202 = vcmp.ge.s32.totalorder %v201, 1
      %205 = vrot.lane.b32.xlu0 %v198, 121
      %v206 = vpop.permute.xlu0 %205
      %207 = vrot.lane.b32.xlu0 %v199, 121
      %v208 = vpop.permute.xlu0 %207
      %211 = vrot.lane.b32.xlu0 %v198, 1
      %v212 = vpop.permute.xlu0 %211
      %213 = vrot.lane.b32.xlu0 %v199, 1
      %v214 = vpop.permute.xlu0 %213
      %vm217 = vcmask 7168
      %v218 = vsel %vm217, %v206, %v212
      %v219 = vsel %vm217, %v208, %v214
      %v220 = vsel %vm202, 1, 0
      %vm221 = vcmp.eq.s32.totalorder %v220, 1
      %v222 = vsel %vm221, %v218, 0.0
      %v223 = vsel %vm221, %v219, 0.0
      %vm224 = vcmp.lt.s32.totalorder %v201, 7
      %225 = vrot.lane.b32.xlu0 %v198, 127
      %v226 = vpop.permute.xlu0 %225
      %227 = vrot.lane.b32.xlu0 %v199, 127
      %v228 = vpop.permute.xlu0 %227
      %231 = vrot.lane.b32.xlu0 %v198, 7
      %v232 = vpop.permute.xlu0 %231
      %233 = vrot.lane.b32.xlu0 %v199, 7
      %v234 = vpop.permute.xlu0 %233
      %vm237 = vcmask 56320
      %v238 = vsel %vm237, %v226, %v232
      %v239 = vsel %vm237, %v228, %v234
      %v240 = vsel %vm224, 1, 0
      %vm241 = vcmp.eq.s32.totalorder %v240, 1
      %v242 = vsel %vm241, %v238, 0.0
      %v243 = vsel %vm241, %v239, 0.0
      %v244 = vld [vmem:[%s1] sm:$0xf]
      %246 = vrot.lane.b32.xlu0 %v244, 112
      %v247 = vpop.permute.xlu0 %246
      %vm248 = vcmask 130048
      %v249 = vsel %vm248, %v247, 0
      %251 = vmatpush.msra.mxu0 0.0
      %252 = vmatpush.msra.mxu0 0.0
      %253 = vmatpush.msra.mxu0 0.0
      %254 = vmatpush.msra.mxu0 0.0
      %255 = vmatpush.msra.mxu0 0.0
      %256 = vmatpush.msra.mxu0 0.0
      %257 = vmatpush.msra.mxu0 0.0
      %258 = vmatpush.msra.mxu0 0.0
      %259 = vmatpush.msra.mxu0 0.0
      %260 = vmatpush.msra.mxu0 0.0
      %261 = vmatpush.msra.mxu0 0.0
      %262 = vmatpush.msra.mxu0 0.0
      %263 = vmatpush.msra.mxu0 0.0
      %264 = vmatpush.msra.mxu0 0.0
      %265 = vmatpush.msra.mxu0 %v199
      %266 = vmatpush.msra.mxu0 %v198
      %267 = vmatmul.f32.gmra.mxu0 %v249
      %v268 = vpop.f32.mrf.mxu0
      %v269 = vadd.f32 0.0, %v268
      %270 = vdwg.mxu0
      %v271 = vsel %vm248, %v244, 0
      %273 = vmatpush.msra.mxu0 0.0
      %274 = vmatpush.msra.mxu0 0.0
      %275 = vmatpush.msra.mxu0 0.0
      %276 = vmatpush.msra.mxu0 0.0
      %277 = vmatpush.msra.mxu0 0.0
      %278 = vmatpush.msra.mxu0 0.0
      %279 = vmatpush.msra.mxu0 0.0
      %280 = vmatpush.msra.mxu0 0.0
      %281 = vmatpush.msra.mxu0 0.0
      %282 = vmatpush.msra.mxu0 0.0
      %283 = vmatpush.msra.mxu0 0.0
      %284 = vmatpush.msra.mxu0 0.0
      %285 = vmatpush.msra.mxu0 0.0
      %286 = vmatpush.msra.mxu0 0.0
      %287 = vmatpush.msra.mxu0 %v223
      %288 = vmatpush.msra.mxu0 %v222
      %289 = vmatmul.f32.gmra.mxu0 %v271
      %v290 = vpop.f32.mrf.mxu0
      %v291 = vadd.f32 %v269, %v290
      %292 = vdwg.mxu0
      %293 = vrot.lane.b32.xlu0 %v244, 96
      %v294 = vpop.permute.xlu0 %293
      %v295 = vsel %vm248, %v294, 0
      %297 = vmatpush.msra.mxu0 0.0
      %298 = vmatpush.msra.mxu0 0.0
      %299 = vmatpush.msra.mxu0 0.0
      %300 = vmatpush.msra.mxu0 0.0
      %301 = vmatpush.msra.mxu0 0.0
      %302 = vmatpush.msra.mxu0 0.0
      %303 = vmatpush.msra.mxu0 0.0
      %304 = vmatpush.msra.mxu0 0.0
      %305 = vmatpush.msra.mxu0 0.0
      %306 = vmatpush.msra.mxu0 0.0
      %307 = vmatpush.msra.mxu0 0.0
      %308 = vmatpush.msra.mxu0 0.0
      %309 = vmatpush.msra.mxu0 0.0
      %310 = vmatpush.msra.mxu0 0.0
      %311 = vmatpush.msra.mxu0 %v243
      %312 = vmatpush.msra.mxu0 %v242
      %313 = vmatmul.f32.gmra.mxu0 %v295
      %v314 = vpop.f32.mrf.mxu0
      %v315 = vadd.f32 0.0, %v314
      %316 = vdwg.mxu0
      %v317 = vadd.f32 %v291, %v315
      %v318 = vld [vmem:[%s2] sm:$0xf]
      %320 = vset.pattern.permute.xlu0 0
      %321 = vperm.xlu0 %320, %v318
      %v322 = vpop.permute.xlu0 %321
      %v324 = vadd.f32 %v317, %v322
      %v325 = vmax.f32 %v324, 0.0
      %vm326 = vcmp.ge.s32.totalorder %v201, 2
      %328 = vrot.lane.b32.xlu0 %v325, 122
      %v329 = vpop.permute.xlu0 %328
      %331 = vrot.lane.b32.xlu0 %v325, 2
      %v332 = vpop.permute.xlu0 %331
      %vm334 = vcmask 15360
      %v335 = vsel %vm334, %v329, %v332
      %v336 = vsel %vm326, 1, 0
      %vm337 = vcmp.eq.s32.totalorder %v336, 1
      %v338 = vsel %vm337, %v335, 0.0
      %vm339 = vcmp.lt.s32.totalorder %v201, 6
      %340 = vrot.lane.b32.xlu0 %v325, 126
      %v341 = vpop.permute.xlu0 %340
      %343 = vrot.lane.b32.xlu0 %v325, 6
      %v344 = vpop.permute.xlu0 %343
      %vm346 = vcmask 48128
      %v347 = vsel %vm346, %v341, %v344
      %v348 = vsel %vm339, 1, 0
      %vm349 = vcmp.eq.s32.totalorder %v348, 1
      %v350 = vsel %vm349, %v347, 0.0
      %v351 = vld [vmem:[%s3] sm:$0xff]
      %v352 = vld [vmem:[%s3 + $0x8] sm:$0xff]
      %355 = vrot.lane.b32.xlu0 %v351, 124
      %v356 = vpop.permute.xlu0 %355
      %357 = vrot.lane.b32.xlu0 %v352, 124
      %v358 = vpop.permute.xlu0 %357
      %vm359 = vcmask 31744
      %v360 = vsel %vm359, %v356, 0
      %v362 = vsel %vm359, %v358, 0
      %vm364 = vcmask 1043456
      %v365 = vsel %vm364, %v325, 0
      %367 = vmatpush.msra.mxu0 0.0
      %368 = vmatpush.msra.mxu0 0.0
      %369 = vmatpush.msra.mxu0 0.0
      %370 = vmatpush.msra.mxu0 0.0
      %371 = vmatpush.msra.mxu0 0.0
      %372 = vmatpush.msra.mxu0 0.0
      %373 = vmatpush.msra.mxu0 0.0
      %374 = vmatpush.msra.mxu0 0.0
      %375 = vmatpush.msra.mxu0 0.0
      %376 = vmatpush.msra.mxu0 0.0
      %377 = vmatpush.msra.mxu0 0.0
      %378 = vmatpush.msra.mxu0 0.0
      %379 = vmatpush.msra.mxu0 0.0
      %380 = vmatpush.msra.mxu0 0.0
      %381 = vmatpush.msra.mxu0 0.0
      %382 = vmatpush.msra.mxu0 %v365
      %383 = vmatmul.f32.gmra.mxu0 %v360
      %v384 = vpop.f32.mrf.mxu0
      %v385 = vadd.f32 0.0, %v384
      %386 = vmatmul.f32.gmra.mxu0 %v362
      %v387 = vpop.f32.mrf.mxu0
      %v388 = vadd.f32 0.0, %v387
      %389 = vdwg.mxu0
      %v390 = vsel %vm359, %v351, 0
      %v392 = vsel %vm359, %v352, 0
      %v395 = vsel %vm364, %v338, 0
      %397 = vmatpush.msra.mxu0 0.0
      %398 = vmatpush.msra.mxu0 0.0
      %399 = vmatpush.msra.mxu0 0.0
      %400 = vmatpush.msra.mxu0 0.0
      %401 = vmatpush.msra.mxu0 0.0
      %402 = vmatpush.msra.mxu0 0.0
      %403 = vmatpush.msra.mxu0 0.0
      %404 = vmatpush.msra.mxu0 0.0
      %405 = vmatpush.msra.mxu0 0.0
      %406 = vmatpush.msra.mxu0 0.0
      %407 = vmatpush.msra.mxu0 0.0
      %408 = vmatpush.msra.mxu0 0.0
      %409 = vmatpush.msra.mxu0 0.0
      %410 = vmatpush.msra.mxu0 0.0
      %411 = vmatpush.msra.mxu0 0.0
      %412 = vmatpush.msra.mxu0 %v395
      %413 = vmatmul.f32.gmra.mxu0 %v390
      %v414 = vpop.f32.mrf.mxu0
      %v415 = vadd.f32 %v385, %v414
      %416 = vmatmul.f32.gmra.mxu0 %v392
      %v417 = vpop.f32.mrf.mxu0
      %v418 = vadd.f32 %v388, %v417
      %419 = vdwg.mxu0
      %420 = vrot.lane.b32.xlu0 %v351, 120
      %v421 = vpop.permute.xlu0 %420
      %422 = vrot.lane.b32.xlu0 %v352, 120
      %v423 = vpop.permute.xlu0 %422
      %v424 = vsel %vm359, %v421, 0
      %v426 = vsel %vm359, %v423, 0
      %v429 = vsel %vm364, %v350, 0
      %431 = vmatpush.msra.mxu0 0.0
      %432 = vmatpush.msra.mxu0 0.0
      %433 = vmatpush.msra.mxu0 0.0
      %434 = vmatpush.msra.mxu0 0.0
      %435 = vmatpush.msra.mxu0 0.0
      %436 = vmatpush.msra.mxu0 0.0
      %437 = vmatpush.msra.mxu0 0.0
      %438 = vmatpush.msra.mxu0 0.0
      %439 = vmatpush.msra.mxu0 0.0
      %440 = vmatpush.msra.mxu0 0.0
      %441 = vmatpush.msra.mxu0 0.0
      %442 = vmatpush.msra.mxu0 0.0
      %443 = vmatpush.msra.mxu0 0.0
      %444 = vmatpush.msra.mxu0 0.0
      %445 = vmatpush.msra.mxu0 0.0
      %446 = vmatpush.msra.mxu0 %v429
      %447 = vmatmul.f32.gmra.mxu0 %v424
      %v448 = vpop.f32.mrf.mxu0
      %v449 = vadd.f32 0.0, %v448
      %450 = vmatmul.f32.gmra.mxu0 %v426
      %v451 = vpop.f32.mrf.mxu0
      %v452 = vadd.f32 0.0, %v451
      %453 = vdwg.mxu0
      %v454 = vadd.f32 %v415, %v449
      %v455 = vadd.f32 %v418, %v452
      %v456 = vxor.u32 %v454, 2147483648
      %v457 = vxor.u32 %v455, 2147483648
      %v458 = vmul.f32 %v456, 1.442695
      %v459 = vpow.pop %v458
      %v460 = vmul.f32 %v457, 1.442695
      %v461 = vpow.pop %v460
      %v462 = vadd.f32 %v459, 1.0
      %v463 = vadd.f32 %v461, 1.0
      %v464 = vrcp.pop %v462
      %v465 = vmul.f32 %v462, %v464
      %v466 = vsub.f32 1.0, %v465
      %v467 = vmul.f32 %v464, %v466
      %v468 = vadd.f32 %v464, %v467
      %vm469 = vweird.f32 %v462
      %vm470 = vweird.f32 %v464
      %vm471 = vmor %vm469, %vm470
      %v472 = vsel %vm471, %v464, %v468
      %v473 = vand.u32 2147483647, %v462
      %vm474 = vcmp.eq.f32.partialorder %v473, 8.507059e+37
      %v475 = vand.u32 %v462, 2147483648
      %v476 = vor.u32 1.1754944e-38, %v475
      %v477 = vsel %vm474, %v476, %v472
      %v478 = vmul.f32 1.0, %v477
      %v479 = vrcp.pop %v463
      %v480 = vmul.f32 %v463, %v479
      %v481 = vsub.f32 1.0, %v480
      %v482 = vmul.f32 %v479, %v481
      %v483 = vadd.f32 %v479, %v482
      %vm484 = vweird.f32 %v463
      %vm485 = vweird.f32 %v479
      %vm486 = vmor %vm484, %vm485
      %v487 = vsel %vm486, %v479, %v483
      %v488 = vand.u32 2147483647, %v463
      %vm489 = vcmp.eq.f32.partialorder %v488, 8.507059e+37
      %v490 = vand.u32 %v463, 2147483648
      %v491 = vor.u32 1.1754944e-38, %v490
      %v492 = vsel %vm489, %v491, %v487
      %v493 = vmul.f32 1.0, %v492
      %v494 = vadd.f32 %v478, 1.0
      %v495 = vadd.f32 %v493, 1.0
      %vm496 = vcmask 64512
      %497 = vst.msk [vmem:[%s197] sm:$0xff] %vm496, %v494
      %498 = vst.msk [vmem:[%s197 + $0x8] sm:$0xff] %vm496, %v495
      %p499 = scmp.lt.s32.totalorder %s15, 1
      %s500 = scalar_select %p499, %s15, 1
      %s501 = smul.addr %s500, 2
      %s502 = smul.addr %s501, 8
      %s503 = scalar_lea.vmem %s4, %s502
      // Predicated region
      $region37: #{tpu_custom_call.1} parent=35 // pred_check
        %p504 = pneg %p122
      $region38: #{tpu_custom_call.1} parent=35 // pred_check_branch
        %506 = sbr.rel (%p504) target = $region40
      $region39: #{tpu_custom_call.1} parent=35 // pred_region
        _
      $region40: #{tpu_custom_call.1} parent=35 // pred_fallthru
        _
    $region36: #{tpu_custom_call.1} parent=5 // pred_fallthru
      _
    %p507 = scmp.le.s32.totalorder 2, %s10
    // Predicated region
    $region41: #{tpu_custom_call.1} parent=5 // pred_check
      %p508 = pneg %p507
    $region42: #{tpu_custom_call.1} parent=5 // pred_check_branch
      %510 = sbr.rel (%p508) target = $region44
    $region43: #{tpu_custom_call.1} parent=5 // pred_region
      %s511 = ssub.s32 %s10, 2
      // Predicated region
      $region45: #{tpu_custom_call.1} parent=43 // pred_check
        %p512 = pneg %p128
      $region46: #{tpu_custom_call.1} parent=43 // pred_check_branch
        %514 = sbr.rel (%p512) target = $region48
      $region47: #{tpu_custom_call.1} parent=43 // pred_region
        %p515 = scmp.lt.s32.totalorder %s16, 1
        %s516 = scalar_select %p515, %s16, 1
        %s517 = smul.addr %s516, 2
        %s518 = smul.addr %s517, 8
        %s519 = scalar_lea.vmem %s4, %s518
      $region48: #{tpu_custom_call.1} parent=43 // pred_fallthru
        _
    $region44: #{tpu_custom_call.1} parent=5 // pred_fallthru
      _
  $region6: #{tpu_custom_call.1} parent=0 // loop_footer
    %s14 = sadd.s32 1, %s10
  $region7: #{tpu_custom_call.1} parent=0 // loop_footer_branch
    %9 = sbr.rel target = $region3
  $region8: #{tpu_custom_call.1} parent=0 // loop_exit
    _

</llo_original>
